<compile_context>
chip_gen: v6e
topology: v6e:2x2x1
jax: 0.10.0
libtpu: 0.0.40
codegen_flags: <defaults>
</compile_context>

<pallas_src>
import jax
import jax.numpy as jnp
from jax.experimental import pallas as pl
from jax.experimental.pallas import tpu as pltpu


def _round_up(x, m):
    return ((x + m - 1) // m) * m


def mlp_kernel(x_ref, w1_ref, b1_ref, w2_ref, b2_ref, o_ref):
    # layer1[0]: Linear(n_feature, n_hidden)
    h = jnp.dot(x_ref[...], w1_ref[...], preferred_element_type=jnp.float32)
    # layer1[1]: ReLU (bias add + relu fused, h stays VMEM/vreg resident)
    h = jnp.maximum(h + b1_ref[...], 0.0)
    # layer1[2]: Linear(n_hidden, n_output)
    out = jnp.dot(h.astype(w2_ref.dtype), w2_ref[...],
                  preferred_element_type=jnp.float32)
    o_ref[...] = (out + b2_ref[...]).astype(o_ref.dtype)


def net_forward(x, w1, b1, w2, b2, *, block_b=8192, operand_dtype=None):
    """Pallas forward pass: y = relu(x @ w1 + b1) @ w2 + b2.

    x: (B, F); w1: (F, H); b1: (H,); w2: (H, O); b2: (O,)
    """
    B, F = x.shape
    F2, H = w1.shape
    H2, O = w2.shape
    assert F2 == F and H2 == H and b1.shape == (H,) and b2.shape == (O,)

    op_dt = jnp.dtype(operand_dtype) if operand_dtype is not None else x.dtype
    out_dt = x.dtype

    # Sublane packing depends on element width (f32:8, bf16:16, int8/fp8:32).
    isz = op_dt.itemsize
    sub = {4: 8, 2: 16, 1: 32}.get(isz, 8)

    # Batch tile: big (amortizes per-step overhead), sublane-aligned, and
    # split into >= 2 grid steps when B is large enough so v7x's 2 TCs both
    # get work under dimension_semantics=("parallel",).
    TB = min(_round_up(block_b, sub), _round_up(B, sub))
    if B > 2 * sub and pl.cdiv(B, TB) < 2:
        TB = _round_up(pl.cdiv(B, 2), sub)
    grid = (pl.cdiv(B, TB),)

    # Operands: no padding; only cast if an explicit operand dtype was asked.
    x_in = x if x.dtype == op_dt else x.astype(op_dt)
    w1_in = w1 if w1.dtype == op_dt else w1.astype(op_dt)
    w2_in = w2 if w2.dtype == op_dt else w2.astype(op_dt)
    b1_in = b1.reshape(1, H).astype(jnp.float32)
    b2_in = b2.reshape(1, O).astype(jnp.float32)

    # VMEM budget from the real working set: double-buffered x/out tiles,
    # resident weights/biases, f32 intermediate h; 2x headroom, <= 32 MiB.
    out_isz = jnp.dtype(out_dt).itemsize
    per_step = 2 * TB * F * isz + 2 * TB * O * out_isz
    resident = (F * H + H * O) * isz + (H + O) * 4
    scratch = TB * H * 4
    vmem_bytes = int(min(max(2 * (per_step + resident + scratch), 4 << 20),
                         32 << 20))

    cost = pl.CostEstimate(
        flops=2 * B * (F * H + H * O),
        transcendentals=0,
        bytes_accessed=(B * F * isz + B * O * out_isz
                        + (F * H + H * O) * isz + (H + O) * 4),
    )

    out = pl.pallas_call(
        mlp_kernel,
        out_shape=jax.ShapeDtypeStruct((B, O), out_dt),
        grid=grid,
        in_specs=[
            pl.BlockSpec((TB, F), lambda i: (i, 0)),   # x: streamed per tile
            pl.BlockSpec((F, H), lambda i: (0, 0)),    # w1: resident
            pl.BlockSpec((1, H), lambda i: (0, 0)),    # b1: resident
            pl.BlockSpec((H, O), lambda i: (0, 0)),    # w2: resident
            pl.BlockSpec((1, O), lambda i: (0, 0)),    # b2: resident
        ],
        out_specs=pl.BlockSpec((TB, O), lambda i: (i, 0)),
        compiler_params=pltpu.CompilerParams(
            dimension_semantics=("parallel",),
            vmem_limit_bytes=vmem_bytes,
        ),
        cost_estimate=cost,
    )(x_in, w1_in, b1_in, w2_in, b2_in)

    return out


def init_params(key, n_feature, n_hidden, n_output, dtype=jnp.float32):
    """Deterministic init matching torch.nn.Linear shapes (stored transposed)."""
    k1, k2, k3, k4 = jax.random.split(key, 4)
    lim1 = 1.0 / jnp.sqrt(n_feature)
    lim2 = 1.0 / jnp.sqrt(n_hidden)
    w1 = jax.random.uniform(k1, (n_feature, n_hidden), dtype, -lim1, lim1)
    b1 = jax.random.uniform(k2, (n_hidden,), dtype, -lim1, lim1)
    w2 = jax.random.uniform(k3, (n_hidden, n_output), dtype, -lim2, lim2)
    b2 = jax.random.uniform(k4, (n_output,), dtype, -lim2, lim2)
    return w1, b1, w2, b2


def _ref(x, w1, b1, w2, b2):
    return jnp.maximum(x @ w1 + b1, 0.0) @ w2 + b2


if __name__ == "__main__":
    # Small point-classification-style shapes: 2 features, hidden=32, 2 classes.
    n_feature, n_hidden, n_output = 2, 32, 2

    key = jax.random.PRNGKey(0)
    kx, kp, kx2 = jax.random.split(key, 3)
    w1, b1, w2, b2 = init_params(kp, n_feature, n_hidden, n_output)

    # Case 1: tiny batch (matches original usage), single grid step.
    x_small = jax.random.normal(kx, (8, n_feature), jnp.float32)
    out_small = jax.block_until_ready(net_forward(x_small, w1, b1, w2, b2))
    assert out_small.shape == (8, n_output)
    assert jnp.allclose(out_small, _ref(x_small, w1, b1, w2, b2),
                        atol=1e-5, rtol=1e-5)

    # Case 2: larger, non-multiple batch — exercises the cdiv grid (2 steps,
    # partial last block masked by Pallas) and resident weights across steps.
    x_big = jax.random.normal(kx2, (1030, n_feature), jnp.float32)
    out_big = jax.block_until_ready(net_forward(x_big, w1, b1, w2, b2))
    assert out_big.shape == (1030, n_output)
    assert jnp.allclose(out_big, _ref(x_big, w1, b1, w2, b2),
                        atol=1e-5, rtol=1e-5)

    # TODO(synk): cal_loss (CrossEntropyLoss) is training-side glue, not part
    # of forward(); left out of the kernel.
    print("KERNEL_OK")
</pallas_src>

<mosaic_0001>
module attributes {stable_mosaic.version = 11 : i64} {
  func.func @mlp_kernel(%arg0: i32, %arg1: memref<8x2xf32, #tpu.memory_space<vmem>>, %arg2: memref<2x32xf32, #tpu.memory_space<vmem>>, %arg3: memref<1x32xf32, #tpu.memory_space<vmem>>, %arg4: memref<32x2xf32, #tpu.memory_space<vmem>>, %arg5: memref<1x2xf32, #tpu.memory_space<vmem>>, %arg6: memref<8x2xf32, #tpu.memory_space<vmem>>) attributes {dimension_semantics = [#tpu.dimension_semantics<parallel>], iteration_bounds = array<i64: 1>, scalar_prefetch = 0 : i64, scratch_operands = 0 : i64, tpu.core_type = #tpu.core_type<tc>, window_params = [{transform_indices = @transform_0, window_bounds = array<i64: 8, 2>}, {pipeline_mode = #tpu.pipeline_mode<synchronous>, transform_indices = @transform_1, window_bounds = array<i64: 2, 32>}, {pipeline_mode = #tpu.pipeline_mode<synchronous>, transform_indices = @transform_2, window_bounds = array<i64: 1, 32>}, {pipeline_mode = #tpu.pipeline_mode<synchronous>, transform_indices = @transform_3, window_bounds = array<i64: 32, 2>}, {pipeline_mode = #tpu.pipeline_mode<synchronous>, transform_indices = @transform_4, window_bounds = array<i64: 1, 2>}, {transform_indices = @transform_5, window_bounds = array<i64: 8, 2>}]} {
    %c0 = arith.constant 0 : index
    %c0_0 = arith.constant 0 : index
    %0 = vector.load %arg1[%c0, %c0_0] : memref<8x2xf32, #tpu.memory_space<vmem>>, vector<8x2xf32>
    %c0_1 = arith.constant 0 : index
    %c0_2 = arith.constant 0 : index
    %1 = vector.load %arg2[%c0_1, %c0_2] : memref<2x32xf32, #tpu.memory_space<vmem>>, vector<2x32xf32>
    %cst = arith.constant dense<0.000000e+00> : vector<8x32xf32>
    %2 = tpu.matmul %0, %1, %cst {dimension_numbers = #tpu.dot_dimension_numbers<[1], [0], [0], [1], [0, 0, 1, 1], [], []>} : vector<8x2xf32>, vector<2x32xf32>, vector<8x32xf32> -> vector<8x32xf32>
    %c0_3 = arith.constant 0 : index
    %c0_4 = arith.constant 0 : index
    %3 = vector.load %arg3[%c0_3, %c0_4] : memref<1x32xf32, #tpu.memory_space<vmem>>, vector<1x32xf32>
    %4 = vector.broadcast %3 : vector<1x32xf32> to vector<8x32xf32>
    %5 = arith.addf %2, %4 : vector<8x32xf32>
    %cst_5 = arith.constant 0.000000e+00 : f32
    %6 = vector.broadcast %cst_5 : f32 to vector<8x32xf32>
    %7 = arith.maximumf %5, %6 : vector<8x32xf32>
    %c0_6 = arith.constant 0 : index
    %c0_7 = arith.constant 0 : index
    %8 = vector.load %arg4[%c0_6, %c0_7] : memref<32x2xf32, #tpu.memory_space<vmem>>, vector<32x2xf32>
    %cst_8 = arith.constant dense<0.000000e+00> : vector<8x2xf32>
    %9 = tpu.matmul %7, %8, %cst_8 {dimension_numbers = #tpu.dot_dimension_numbers<[1], [0], [0], [1], [0, 0, 1, 1], [], []>} : vector<8x32xf32>, vector<32x2xf32>, vector<8x2xf32> -> vector<8x2xf32>
    %c0_9 = arith.constant 0 : index
    %c0_10 = arith.constant 0 : index
    %10 = vector.load %arg5[%c0_9, %c0_10] : memref<1x2xf32, #tpu.memory_space<vmem>>, vector<1x2xf32>
    %11 = vector.broadcast %10 : vector<1x2xf32> to vector<8x2xf32>
    %12 = arith.addf %9, %11 : vector<8x2xf32>
    %c0_11 = arith.constant 0 : index
    %c0_12 = arith.constant 0 : index
    %13 = vector.load %arg6[%c0_11, %c0_12] : memref<8x2xf32, #tpu.memory_space<vmem>>, vector<8x2xf32>
    tpu.vector_store %arg6[%c0_11, %c0_12], %12 {strides = array<i32>} : memref<8x2xf32, #tpu.memory_space<vmem>>, vector<8x2xf32>,
    return
  }
  func.func @transform_0(%arg0: i32) -> (i32, i32) {
    %c0_i32 = arith.constant 0 : i32
    %c0_i32_0 = arith.constant 0 : i32
    return %arg0, %c0_i32 : i32, i32
  }
  func.func @transform_1(%arg0: i32) -> (i32, i32) {
    %c0_i32 = arith.constant 0 : i32
    %c0_i32_0 = arith.constant 0 : i32
    %c0_i32_1 = arith.constant 0 : i32
    return %c0_i32, %c0_i32_0 : i32, i32
  }
  func.func @transform_2(%arg0: i32) -> (i32, i32) {
    %c0_i32 = arith.constant 0 : i32
    %c0_i32_0 = arith.constant 0 : i32
    %c0_i32_1 = arith.constant 0 : i32
    return %c0_i32, %c0_i32_0 : i32, i32
  }
  func.func @transform_3(%arg0: i32) -> (i32, i32) {
    %c0_i32 = arith.constant 0 : i32
    %c0_i32_0 = arith.constant 0 : i32
    %c0_i32_1 = arith.constant 0 : i32
    return %c0_i32, %c0_i32_0 : i32, i32
  }
  func.func @transform_4(%arg0: i32) -> (i32, i32) {
    %c0_i32 = arith.constant 0 : i32
    %c0_i32_0 = arith.constant 0 : i32
    %c0_i32_1 = arith.constant 0 : i32
    return %c0_i32, %c0_i32_0 : i32, i32
  }
  func.func @transform_5(%arg0: i32) -> (i32, i32) {
    %c0_i32 = arith.constant 0 : i32
    %c0_i32_0 = arith.constant 0 : i32
    return %arg0, %c0_i32 : i32, i32
  }
}

</mosaic_0001>

<llo_original>
// kernel: tpu_custom_call.1
$region0: #{tpu_custom_call.1}
  #allocation0 [shape = 'u32[]', space=smem, size = 0x4, offset = 0x4, fixed_abs, tag = 'smem constant byte address 0x4 - core index']
  #allocation1 [shape = 'u32[144,128]{1,0:T(1,128)}', space=vmem, size = 0x12000, scoped, tag = 'internal scratch']
  %s0 = inlined_call_operand.vmem [shape: f32[8,2], index: 0, kind: input, shape index: {}]
  %s1 = inlined_call_operand.vmem [shape: f32[2,32], index: 1, kind: input, shape index: {}]
  %s2 = inlined_call_operand.vmem [shape: f32[1,32], index: 2, kind: input, shape index: {}]
  %s3 = inlined_call_operand.vmem [shape: f32[32,2], index: 3, kind: input, shape index: {}]
  %s4 = inlined_call_operand.vmem [shape: f32[1,2], index: 4, kind: input, shape index: {}]
  %s5 = inlined_call_operand.vmem [shape: f32[8,2], index: 5, kind: output, shape index: {}]
  %s6 = sld [smem:[#allocation0]]
  $region30: #{tpu_custom_call.1} parent=0
    _
  %s8 = ssub.s32 1, %s6
  %s9 = scalar_select 0, %s8, %s6
  // Predicated region
  $region2: #{tpu_custom_call.1} parent=0 // pred_check
    _
  $region3: #{tpu_custom_call.1} parent=0 // pred_check_branch
    %11 = sbr.rel (0) target = $region5
  $region4: #{tpu_custom_call.1} parent=0 // pred_region
    _
  $region5: #{tpu_custom_call.1} parent=0 // pred_fallthru
    _
  // Predicated region
  $region6: #{tpu_custom_call.1} parent=0 // pred_check
    _
  $region7: #{tpu_custom_call.1} parent=0 // pred_check_branch
    %13 = sbr.rel (0) target = $region9
  $region8: #{tpu_custom_call.1} parent=0 // pred_region
    _
  $region9: #{tpu_custom_call.1} parent=0 // pred_fallthru
    _
  // Predicated region
  $region10: #{tpu_custom_call.1} parent=0 // pred_check
    _
  $region11: #{tpu_custom_call.1} parent=0 // pred_check_branch
    %15 = sbr.rel (0) target = $region13
  $region12: #{tpu_custom_call.1} parent=0 // pred_region
    _
  $region13: #{tpu_custom_call.1} parent=0 // pred_fallthru
    _
  // Predicated region
  $region14: #{tpu_custom_call.1} parent=0 // pred_check
    _
  $region15: #{tpu_custom_call.1} parent=0 // pred_check_branch
    %17 = sbr.rel (0) target = $region17
  $region16: #{tpu_custom_call.1} parent=0 // pred_region
    _
  $region17: #{tpu_custom_call.1} parent=0 // pred_fallthru
    _
  // Predicated region
  $region18: #{tpu_custom_call.1} parent=0 // pred_check
    _
  $region19: #{tpu_custom_call.1} parent=0 // pred_check_branch
    %19 = sbr.rel (0) target = $region21
  $region20: #{tpu_custom_call.1} parent=0 // pred_region
    _
  $region21: #{tpu_custom_call.1} parent=0 // pred_fallthru
    _
  %v20 = vld [vmem:[%s0] sm:$0xff]
  %v21 = vld [vmem:[%s1] sm:$0x3]
  %v22 = vld [vmem:[%s2] sm:$0x1]
  %v24 = vlaneseq
  %v25 = vshrl.u32 %v24, 7
  %v26 = vsub.s32 0, %v25
  %v27 = vrot.slane %v22, %v26
  %vm29 = vcmask 15360
  %v31 = vsel %vm29, %v20, 0
  %vm33 = vcmask 1041408
  %v35 = vsel %vm33, %v21, 0
  %37 = vmatprep.subr.mxu0 0.0
  %38 = vmatpush1.msra.mxu0 0.0
  %39 = vmatprep.subr.mxu0 0.0
  %40 = vmatpush1.msra.mxu0 0.0
  %41 = vmatprep.subr.mxu0 0.0
  %42 = vmatpush1.msra.mxu0 0.0
  %43 = vmatprep.subr.mxu0 0.0
  %44 = vmatpush1.msra.mxu0 0.0
  %45 = vmatprep.subr.mxu0 0.0
  %46 = vmatpush1.msra.mxu0 0.0
  %47 = vmatprep.subr.mxu0 0.0
  %48 = vmatpush1.msra.mxu0 0.0
  %49 = vmatprep.subr.mxu0 0.0
  %50 = vmatpush1.msra.mxu0 0.0
  %51 = vmatprep.subr.mxu0 0.0
  %52 = vmatpush1.msra.mxu0 0.0
  %53 = vmatprep.subr.mxu0 0.0
  %54 = vmatpush1.msra.mxu0 0.0
  %55 = vmatprep.subr.mxu0 0.0
  %56 = vmatpush1.msra.mxu0 0.0
  %57 = vmatprep.subr.mxu0 0.0
  %58 = vmatpush1.msra.mxu0 0.0
  %59 = vmatprep.subr.mxu0 0.0
  %60 = vmatpush1.msra.mxu0 0.0
  %61 = vmatprep.subr.mxu0 0.0
  %62 = vmatpush1.msra.mxu0 0.0
  %63 = vmatprep.subr.mxu0 0.0
  %64 = vmatpush1.msra.mxu0 0.0
  %65 = vmatprep.subr.mxu0 0.0
  %66 = vmatpush1.msra.mxu0 0.0
  %67 = vmatprep.subr.mxu0 0.0
  %68 = vmatpush1.msra.mxu0 %v35
  %69 = vmatprep.subr.mxu0 0.0
  %70 = vmatpush2.msra.mxu0 0.0
  %71 = vmatprep.subr.mxu0 0.0
  %72 = vmatpush2.msra.mxu0 0.0
  %73 = vmatprep.subr.mxu0 0.0
  %74 = vmatpush2.msra.mxu0 0.0
  %75 = vmatprep.subr.mxu0 0.0
  %76 = vmatpush2.msra.mxu0 0.0
  %77 = vmatprep.subr.mxu0 0.0
  %78 = vmatpush2.msra.mxu0 0.0
  %79 = vmatprep.subr.mxu0 0.0
  %80 = vmatpush2.msra.mxu0 0.0
  %81 = vmatprep.subr.mxu0 0.0
  %82 = vmatpush2.msra.mxu0 0.0
  %83 = vmatprep.subr.mxu0 0.0
  %84 = vmatpush2.msra.mxu0 0.0
  %85 = vmatprep.subr.mxu0 0.0
  %86 = vmatpush2.msra.mxu0 0.0
  %87 = vmatprep.subr.mxu0 0.0
  %88 = vmatpush2.msra.mxu0 0.0
  %89 = vmatprep.subr.mxu0 0.0
  %90 = vmatpush2.msra.mxu0 0.0
  %91 = vmatprep.subr.mxu0 0.0
  %92 = vmatpush2.msra.mxu0 0.0
  %93 = vmatprep.subr.mxu0 0.0
  %94 = vmatpush2.msra.mxu0 0.0
  %95 = vmatprep.subr.mxu0 0.0
  %96 = vmatpush2.msra.mxu0 0.0
  %97 = vmatprep.subr.mxu0 0.0
  %98 = vmatpush2.msra.mxu0 0.0
  %99 = vmatprep.subr.mxu0 0.0
  %100 = vmatpush2.msra.mxu0 0.0
  %101 = vmatprep.mubr.f32.mxu0 0.0
  %102 = vmatmul.mubr.f32.gmra.mxu0 %v31
  %v103 = vpop.f32.mrf.mxu0
  %v104 = vadd.f32 %v27, %v103
  %v105 = vpop.f32.mrf.mxu0
  %106 = vdwg.mxu0
  %v107 = vmax.f32 %v104, 0.0
  %v108 = vld [vmem:[%s3] sm:$0xff]
  %v109 = vld [vmem:[%s3 + $0x8] sm:$0xff]
  %v110 = vld [vmem:[%s3 + $0x10] sm:$0xff]
  %v111 = vld [vmem:[%s3 + $0x18] sm:$0xff]
  %v112 = vld [vmem:[%s4] sm:$0x1]
  %v114 = vlaneseq
  %v115 = vshrl.u32 %v114, 7
  %v116 = vsub.s32 0, %v115
  %v117 = vrot.slane %v112, %v116
  %vm119 = vcmask 261120
  %v121 = vsel %vm119, %v107, 0
  %123 = vmatprep.subr.mxu0 0.0
  %124 = vmatpush1.msra.mxu0 0.0
  %125 = vmatprep.subr.mxu0 0.0
  %126 = vmatpush1.msra.mxu0 0.0
  %127 = vmatprep.subr.mxu0 0.0
  %128 = vmatpush1.msra.mxu0 0.0
  %129 = vmatprep.subr.mxu0 0.0
  %130 = vmatpush1.msra.mxu0 0.0
  %131 = vmatprep.subr.mxu0 0.0
  %132 = vmatpush1.msra.mxu0 0.0
  %133 = vmatprep.subr.mxu0 0.0
  %134 = vmatpush1.msra.mxu0 0.0
  %135 = vmatprep.subr.mxu0 0.0
  %136 = vmatpush1.msra.mxu0 0.0
  %137 = vmatprep.subr.mxu0 0.0
  %138 = vmatpush1.msra.mxu0 0.0
  %139 = vmatprep.subr.mxu0 0.0
  %140 = vmatpush1.msra.mxu0 0.0
  %141 = vmatprep.subr.mxu0 0.0
  %142 = vmatpush1.msra.mxu0 0.0
  %143 = vmatprep.subr.mxu0 0.0
  %144 = vmatpush1.msra.mxu0 0.0
  %145 = vmatprep.subr.mxu0 0.0
  %146 = vmatpush1.msra.mxu0 0.0
  %147 = vmatprep.subr.mxu0 0.0
  %148 = vmatpush1.msra.mxu0 %v111
  %149 = vmatprep.subr.mxu0 0.0
  %150 = vmatpush1.msra.mxu0 %v110
  %151 = vmatprep.subr.mxu0 0.0
  %152 = vmatpush1.msra.mxu0 %v109
  %153 = vmatprep.subr.mxu0 0.0
  %154 = vmatpush1.msra.mxu0 %v108
  %155 = vmatprep.subr.mxu0 0.0
  %156 = vmatpush2.msra.mxu0 0.0
  %157 = vmatprep.subr.mxu0 0.0
  %158 = vmatpush2.msra.mxu0 0.0
  %159 = vmatprep.subr.mxu0 0.0
  %160 = vmatpush2.msra.mxu0 0.0
  %161 = vmatprep.subr.mxu0 0.0
  %162 = vmatpush2.msra.mxu0 0.0
  %163 = vmatprep.subr.mxu0 0.0
  %164 = vmatpush2.msra.mxu0 0.0
  %165 = vmatprep.subr.mxu0 0.0
  %166 = vmatpush2.msra.mxu0 0.0
  %167 = vmatprep.subr.mxu0 0.0
  %168 = vmatpush2.msra.mxu0 0.0
  %169 = vmatprep.subr.mxu0 0.0
  %170 = vmatpush2.msra.mxu0 0.0
  %171 = vmatprep.subr.mxu0 0.0
  %172 = vmatpush2.msra.mxu0 0.0
  %173 = vmatprep.subr.mxu0 0.0
  %174 = vmatpush2.msra.mxu0 0.0
  %175 = vmatprep.subr.mxu0 0.0
  %176 = vmatpush2.msra.mxu0 0.0
  %177 = vmatprep.subr.mxu0 0.0
  %178 = vmatpush2.msra.mxu0 0.0
  %179 = vmatprep.subr.mxu0 0.0
  %180 = vmatpush2.msra.mxu0 0.0
  %181 = vmatprep.subr.mxu0 0.0
  %182 = vmatpush2.msra.mxu0 0.0
  %183 = vmatprep.subr.mxu0 0.0
  %184 = vmatpush2.msra.mxu0 0.0
  %185 = vmatprep.subr.mxu0 0.0
  %186 = vmatpush2.msra.mxu0 0.0
  %187 = vmatprep.mubr.f32.mxu0 0.0
  %188 = vmatmul.mubr.f32.gmra.mxu0 %v121
  %v189 = vpop.f32.mrf.mxu0
  %v190 = vadd.f32 %v117, %v189
  %v191 = vpop.f32.mrf.mxu0
  %192 = vdwg.mxu0
  %193 = vst.msk [vmem:[%s5] sm:$0xff] %vm29, %v190
  // Predicated region
  $region22: #{tpu_custom_call.1} parent=0 // pred_check
    _
  $region23: #{tpu_custom_call.1} parent=0 // pred_check_branch
    %195 = sbr.rel (0) target = $region25
  $region24: #{tpu_custom_call.1} parent=0 // pred_region
    _
  $region25: #{tpu_custom_call.1} parent=0 // pred_fallthru
    _
  // Predicated region
  $region26: #{tpu_custom_call.1} parent=0 // pred_check
    _
  $region27: #{tpu_custom_call.1} parent=0 // pred_check_branch
    %197 = sbr.rel (0) target = $region29
  $region28: #{tpu_custom_call.1} parent=0 // pred_region
    _
  $region29: #{tpu_custom_call.1} parent=0 // pred_fallthru
    _

</llo_original>
